<compile_context>
chip_gen: v6e
topology: v6e:2x2x1
jax: 0.10.0
libtpu: 0.0.40
codegen_flags: <defaults>
</compile_context>

<pallas_src>
import functools

import jax
import jax.numpy as jnp
from jax.experimental import pallas as pl
from jax.experimental.pallas import tpu as pltpu

_POW2_WIDTHS = (4096, 2048, 1024, 512, 256, 128)
_MEGACORE_MIN_BYTES = 1 << 20   # force >=2 grid steps above this (multi-TC parts only)


# ----------------------------------------------------------------------------
# Kernel (shift / alpha / compute dtype baked in as Python literals)
# ----------------------------------------------------------------------------

def _height_filter_kernel(x_ref, o_ref, *, shift, alpha, compute_dtype):
    # relu(x - shift) + shift == max(x, shift), so the module reduces to
    #   out = max(x, shift) * sigmoid(alpha * (x - shift))
    x = x_ref[...].astype(compute_dtype)
    y = jnp.maximum(x, shift) * jax.nn.sigmoid(alpha * (x - shift))
    o_ref[...] = y.astype(o_ref.dtype)


# ----------------------------------------------------------------------------
# Per-generation tiling configuration (static, trace-time)
# ----------------------------------------------------------------------------

def _tpu_config():
    try:
        kind = jax.devices()[0].device_kind.lower()
    except Exception:
        kind = ""
    if "v7" in kind or "tpu7" in kind:
        # 2 TCs/chip, 64 MiB VMEM per TC (32 MiB scoped default), ~3.2 TB/s.
        return dict(block_bytes=4 << 20, vmem_limit=32 << 20,
                    multi_core=True, bf16_compute=True)
    if "v6" in kind:
        # 1 TC, 128 MiB VMEM; bf16 VPU/EUP supported.
        return dict(block_bytes=8 << 20, vmem_limit=64 << 20,
                    multi_core=False, bf16_compute=True)
    if "v5" in kind:
        # v5e scoped default is only 16 MiB -> must raise vmem_limit for 8 MiB blocks.
        # No bf16 VPU/EUP on v5e -> compute in f32.
        return dict(block_bytes=8 << 20, vmem_limit=64 << 20,
                    multi_core=("v5p" in kind), bf16_compute=False)
    # Unknown / older generation: conservative, previously-validated config.
    return dict(block_bytes=2 << 20, vmem_limit=None,
                multi_core=False, bf16_compute=False)


# ----------------------------------------------------------------------------
# Layout selection (all static Python on shapes; never pads / copies the data)
# ----------------------------------------------------------------------------

def _choose_width(n, granule):
    """Pick a lane width that divides n exactly (zero-copy reshape).

    Prefer large power-of-two multiples of 128 with at least `granule` rows;
    otherwise fall back to the largest divisor of n <= 8192 (the BlockSpec
    always covers the full width, so non-128-multiple widths are still legal,
    just slightly less lane-dense)."""
    for w in _POW2_WIDTHS:
        if n % w == 0 and n // w >= granule:
            return w
    for w in _POW2_WIDTHS:
        if n % w == 0:
            return w
    best_pref, best_any = 1, 1
    i = 1
    while i * i <= n:
        if n % i == 0:
            for d in (i, n // i):
                if d <= 8192:
                    if d > best_any:
                        best_any = d
                    if n // d >= granule and d > best_pref:
                        best_pref = d
        i += 1
    return best_pref if best_pref > 1 else best_any


def _block_rows(rows, width, itemsize, block_bytes, granule, force_split):
    """Largest granule-aligned row block that fits the byte budget.

    Does NOT need to divide `rows`: the grid uses cdiv and the trailing
    partial block is handled by Pallas OOB semantics (safe for elementwise)."""
    if rows <= granule:
        return rows                                   # single full-rows block
    by_budget = (block_bytes // (width * itemsize)) // granule * granule
    rb = max(granule, by_budget)
    if force_split:
        # Ensure >=2 grid steps so both TensorCores get work (v7x / v5p).
        half = (pl.cdiv(rows, 2) // granule) * granule
        rb = min(rb, max(granule, half))
    rb = min(rb, (rows // granule) * granule)
    return rb


# ----------------------------------------------------------------------------
# Wrapper
# ----------------------------------------------------------------------------

@functools.partial(jax.jit, static_argnames=("shift", "alpha"))
def height_filter(x, shift=2, alpha=30):
    """Elementwise height filter. Accepts any shape (e.g. NCHW), any float dtype."""
    orig_shape = x.shape

    supported = (jnp.dtype(jnp.float32), jnp.dtype(jnp.bfloat16), jnp.dtype(jnp.float16))
    if jnp.dtype(x.dtype) not in supported:
        x = x.astype(jnp.float32)           # ints / f64 -> f32 (sigmoid needs float)
    dtype = x.dtype
    itemsize = jnp.dtype(dtype).itemsize

    flat = x.reshape(-1)                    # free reshape (no data movement)
    n = flat.shape[0]
    if n == 0:
        return flat.reshape(orig_shape)

    cfg = _tpu_config()
    granule = 8 * max(1, 4 // itemsize)     # sublane granule: 8 f32, 16 bf16/f16
    width = _choose_width(n, granule)

    if width == 1 and n > 8:
        # TODO(synk): no lane-friendly factorization (e.g. huge prime element
        # count); plain XLA elementwise is already at the HBM roofline here.
        return height_filter_ref(x, shift, alpha).reshape(orig_shape)

    rows = n // width
    force_split = cfg["multi_core"] and (n * itemsize >= _MEGACORE_MIN_BYTES)
    row_block = _block_rows(rows, width, itemsize, cfg["block_bytes"],
                            granule, force_split)

    if dtype == jnp.dtype(jnp.bfloat16) and cfg["bf16_compute"]:
        compute_dtype = jnp.bfloat16        # bf16 VPU/EUP (v6e/v7x)
    else:
        compute_dtype = jnp.float32         # f32 compute elsewhere (incl. f16 in)

    kernel = functools.partial(
        _height_filter_kernel,
        shift=float(shift), alpha=float(alpha), compute_dtype=compute_dtype)

    x2d = flat.reshape(rows, width)
    out2d = pl.pallas_call(
        kernel,
        out_shape=jax.ShapeDtypeStruct((rows, width), dtype),
        grid_spec=pltpu.PrefetchScalarGridSpec(
            num_scalar_prefetch=0,
            grid=(pl.cdiv(rows, row_block),),          # partial last block OK
            in_specs=[pl.BlockSpec((row_block, width), lambda i: (i, 0))],
            out_specs=pl.BlockSpec((row_block, width), lambda i: (i, 0)),
        ),
        compiler_params=pltpu.CompilerParams(
            dimension_semantics=("parallel",),
            vmem_limit_bytes=cfg["vmem_limit"]),
    )(x2d)

    return out2d.reshape(orig_shape)


# ----------------------------------------------------------------------------
# Reference (pure JAX) for sanity checking
# ----------------------------------------------------------------------------

def height_filter_ref(x, shift=2, alpha=30):
    sig = jax.nn.sigmoid(alpha * (x - shift))
    relu = jnp.maximum(x - shift, 0.0) + shift
    return relu * sig


if __name__ == "__main__":
    key = jax.random.PRNGKey(0)
    k1, k2, k3 = jax.random.split(key, 3)

    # 1) Small NCHW f32 input, lane-friendly element count (2*4*16*16 = 2048).
    x1 = jax.random.normal(k1, (2, 4, 16, 16), dtype=jnp.float32) * 3.0 + 2.0
    o1 = jax.block_until_ready(height_filter(x1, shift=2, alpha=30))
    r1 = height_filter_ref(x1, 2, 30)
    assert o1.shape == x1.shape and o1.dtype == x1.dtype
    assert jnp.allclose(o1, r1, atol=1e-5, rtol=1e-5), "f32 mismatch vs reference"

    # 2) Awkward shape (element count not a multiple of 128) -> partial-block path.
    x2 = jax.random.normal(k2, (3, 5, 7, 9), dtype=jnp.float32) * 3.0 + 2.0
    o2 = jax.block_until_ready(height_filter(x2))
    r2 = height_filter_ref(x2)
    assert o2.shape == x2.shape
    assert jnp.allclose(o2, r2, atol=1e-5, rtol=1e-5), "odd-shape mismatch vs reference"

    # 3) bf16 input (native bf16 compute on v6e/v7x, f32 compute on v5e/older).
    x3 = (jax.random.normal(k3, (2, 4, 16, 16), dtype=jnp.float32) * 3.0 + 2.0
          ).astype(jnp.bfloat16)
    o3 = jax.block_until_ready(height_filter(x3))
    r3 = height_filter_ref(x3.astype(jnp.float32), 2, 30)
    assert o3.dtype == jnp.bfloat16
    assert jnp.allclose(o3.astype(jnp.float32), r3, atol=1e-1, rtol=5e-2), \
        "bf16 mismatch vs reference"

    print("KERNEL_OK")
</pallas_src>

<mosaic_0001>
module attributes {stable_mosaic.version = 11 : i64} {
  func.func @_height_filter_kernel(%arg0: i32, %arg1: memref<8x256xf32, #tpu.memory_space<vmem>>, %arg2: memref<8x256xf32, #tpu.memory_space<vmem>>) attributes {dimension_semantics = [#tpu.dimension_semantics<parallel>], iteration_bounds = array<i64: 1>, scalar_prefetch = 0 : i64, scratch_operands = 0 : i64, tpu.core_type = #tpu.core_type<tc>, window_params = [{transform_indices = @transform_0, window_bounds = array<i64: 8, 256>}, {transform_indices = @transform_1, window_bounds = array<i64: 8, 256>}]} {
    %c0 = arith.constant 0 : index
    %c0_0 = arith.constant 0 : index
    %0 = vector.load %arg1[%c0, %c0_0] : memref<8x256xf32, #tpu.memory_space<vmem>>, vector<8x256xf32>
    %cst = arith.constant 2.000000e+00 : f32
    %1 = vector.broadcast %cst : f32 to vector<8x256xf32>
    %2 = arith.maximumf %0, %1 : vector<8x256xf32>
    %cst_1 = arith.constant 2.000000e+00 : f32
    %3 = vector.broadcast %cst_1 : f32 to vector<8x256xf32>
    %4 = arith.subf %0, %3 : vector<8x256xf32>
    %cst_2 = arith.constant 3.000000e+01 : f32
    %5 = vector.broadcast %cst_2 : f32 to vector<8x256xf32>
    %6 = arith.mulf %5, %4 : vector<8x256xf32>
    %7 = arith.negf %6 : vector<8x256xf32>
    %8 = math.exp %7 : vector<8x256xf32>
    %cst_3 = arith.constant 1.000000e+00 : f32
    %9 = vector.broadcast %cst_3 : f32 to vector<8x256xf32>
    %10 = arith.addf %9, %8 : vector<8x256xf32>
    %11 = arith.divf %9, %10 : vector<8x256xf32>
    %12 = arith.mulf %2, %11 : vector<8x256xf32>
    %c0_4 = arith.constant 0 : index
    %c0_5 = arith.constant 0 : index
    %13 = vector.load %arg2[%c0_4, %c0_5] : memref<8x256xf32, #tpu.memory_space<vmem>>, vector<8x256xf32>
    tpu.vector_store %arg2[%c0_4, %c0_5], %12 {strides = array<i32>} : memref<8x256xf32, #tpu.memory_space<vmem>>, vector<8x256xf32>,
    return
  }
  func.func @transform_0(%arg0: i32) -> (i32, i32) {
    %c0_i32 = arith.constant 0 : i32
    %c0_i32_0 = arith.constant 0 : i32
    return %arg0, %c0_i32 : i32, i32
  }
  func.func @transform_1(%arg0: i32) -> (i32, i32) {
    %c0_i32 = arith.constant 0 : i32
    %c0_i32_0 = arith.constant 0 : i32
    return %arg0, %c0_i32 : i32, i32
  }
}

</mosaic_0001>

<llo_original>
// kernel: height_filter.1
$region0: #{height_filter.1}
  #allocation0 [shape = 'u32[]', space=smem, size = 0x4, offset = 0x4, fixed_abs, tag = 'smem constant byte address 0x4 - core index']
  #allocation1 [shape = 'u32[144,128]{1,0:T(1,128)}', space=vmem, size = 0x12000, scoped, tag = 'internal scratch']
  %s0 = inlined_call_operand.vmem [shape: f32[8,256], index: 0, kind: input, shape index: {}]
  %s1 = inlined_call_operand.vmem [shape: f32[8,256], index: 1, kind: output, shape index: {}]
  %s2 = sld [smem:[#allocation0]]
  $region14: #{height_filter.1} parent=0
    _
  %s4 = ssub.s32 1, %s2
  %s5 = scalar_select 0, %s4, %s2
  // Predicated region
  $region2: #{height_filter.1} parent=0 // pred_check
    _
  $region3: #{height_filter.1} parent=0 // pred_check_branch
    %7 = sbr.rel (0) target = $region5
  $region4: #{height_filter.1} parent=0 // pred_region
    _
  $region5: #{height_filter.1} parent=0 // pred_fallthru
    _
  %v8 = vld [vmem:[%s0] sm:$0xff]
  %v9 = vld [vmem:[%s0 + $0x8] sm:$0xff]
  %v10 = vmax.f32 %v8, 2.0
  %v11 = vmax.f32 %v9, 2.0
  %v12 = vsub.f32 %v8, 2.0
  %v13 = vsub.f32 %v9, 2.0
  %v14 = vmul.f32 %v12, 30.0
  %v15 = vmul.f32 %v13, 30.0
  %v16 = vxor.u32 %v14, 2147483648
  %v17 = vxor.u32 %v15, 2147483648
  %v18 = vmul.f32 %v16, 1.442695
  %v19 = vpow.pop %v18
  %v20 = vmul.f32 %v17, 1.442695
  %v21 = vpow.pop %v20
  %v22 = vadd.f32 %v19, 1.0
  %v23 = vadd.f32 %v21, 1.0
  %v24 = vrcp.pop %v22
  %v25 = vmul.f32 1.0, %v24
  %v26 = vrcp.pop %v23
  %v27 = vmul.f32 1.0, %v26
  %v28 = vmul.f32 %v10, %v25
  %v29 = vmul.f32 %v11, %v27
  %30 = vst [vmem:[%s1] sm:$0xff] %v28
  %31 = vst [vmem:[%s1 + $0x8] sm:$0xff] %v29
  // Predicated region
  $region6: #{height_filter.1} parent=0 // pred_check
    _
  $region7: #{height_filter.1} parent=0 // pred_check_branch
    %33 = sbr.rel (0) target = $region9
  $region8: #{height_filter.1} parent=0 // pred_region
    _
  $region9: #{height_filter.1} parent=0 // pred_fallthru
    _
  // Predicated region
  $region10: #{height_filter.1} parent=0 // pred_check
    _
  $region11: #{height_filter.1} parent=0 // pred_check_branch
    %35 = sbr.rel (0) target = $region13
  $region12: #{height_filter.1} parent=0 // pred_region
    _
  $region13: #{height_filter.1} parent=0 // pred_fallthru
    _

</llo_original>
